<compile_context>
chip_gen: v7x
topology: tpu7x:2x2x1
jax: 0.10.0
libtpu: 0.0.40
codegen_flags: <defaults>
</compile_context>

<pallas_src>
import jax
import jax.numpy as jnp
from jax import lax
from jax.experimental import pallas as pl
from jax.experimental.pallas import tpu as pltpu


def _make_zero_band_kernel(h, nc, nz, tb):
    """Build the write-only row-zeroing kernel (h, nc, nz, tb are static)."""

    def kernel(x_any, zstart_ref, o_any, zbuf, sem):
        # x_any      : HBM ref (nc, h, w); aliased to o_any, never read.  Kept
        #              rows of the output are simply the original bytes of x.
        # zstart_ref : SMEM int32[1], first row of the zeroed cyclic band.
        # o_any      : HBM ref (nc, h, w) -- same buffer as x_any.
        # zbuf       : VMEM (tb, 1, w) zero source for the row DMAs.
        # sem        : 2 DMA semaphores (double-buffered row copies).
        del x_any  # present only so the output can alias x's HBM buffer

        i = pl.program_id(0)
        # Clamp the ragged last plane-tile; overlap just rewrites zeros.
        row0 = jnp.minimum(i * tb, nc - tb)

        # Scratch is uninitialized and per-core: zero it every grid step.
        zbuf[...] = jnp.zeros_like(zbuf)

        zstart = zstart_ref[0]

        def row_copy(j, slot):
            r = zstart + j                      # zstart < h and j < nz <= h
            r = jnp.where(r >= h, r - h, r)     # cyclic wrap (no modulo needed)
            return pltpu.make_async_copy(
                zbuf,
                o_any.at[pl.ds(row0, tb), pl.ds(r, 1), :],
                sem.at[slot],
            )

        # 2-deep DMA pipeline: start j+1 before waiting on j.
        row_copy(0, 0).start()

        def body(j, carry):
            slot = lax.rem(j, 2)

            @pl.when(j + 1 < nz)
            def _():
                row_copy(j + 1, 1 - slot).start()

            row_copy(j, slot).wait()
            return carry

        lax.fori_loop(0, nz, body, 0)

    return kernel


def _batch_crop_pallas(x, start, *, ratio):
    """BatchCrop forward for a given start row, always via the Pallas kernel."""
    n, c, h, w = x.shape
    # NOTE: band length is derived from W but applied along H, exactly like the
    # PyTorch module (rw = int(ratio * w); rows selected along H).
    rw = int(ratio * w)
    nz = h - rw
    if nz <= 0:
        # Band covers every row -> mask is all ones -> identity (matches torch).
        return x

    nc = n * c
    itemsize = jnp.dtype(x.dtype).itemsize

    # The zero-source VMEM buffer pads its last two dims to (sublane, 128)
    # tiles; size tb so the *padded* buffer stays <= ~4 MiB, comfortably inside
    # the default scoped VMEM on v5e/v6e/v7x (no vmem_limit override needed).
    sublane = {1: 32, 2: 16}.get(itemsize, 8)
    lane = ((w + 127) // 128) * 128
    padded_plane_bytes = sublane * lane * itemsize
    tb = max(1, min(nc, (4 << 20) // padded_plane_bytes))
    # Keep at least two grid steps when possible so both v7x TensorCores get
    # work under dimension_semantics=("parallel",).
    if nc >= 2:
        tb = min(tb, (nc + 1) // 2)
    grid_nc = (nc + tb - 1) // tb

    start = jnp.asarray(start, jnp.int32)
    zstart = ((start + rw) % h).reshape(1)      # first zeroed row of the band

    x_v = x.reshape(nc, h, w)
    kernel = _make_zero_band_kernel(h=h, nc=nc, nz=nz, tb=tb)

    out = pl.pallas_call(
        kernel,
        out_shape=jax.ShapeDtypeStruct((nc, h, w), x.dtype),
        grid=(grid_nc,),
        in_specs=[
            pl.BlockSpec(memory_space=pl.ANY),                  # x (aliased)
            pl.BlockSpec(memory_space=pltpu.MemorySpace.SMEM),  # zstart scalar
        ],
        out_specs=pl.BlockSpec(memory_space=pl.ANY),
        scratch_shapes=[
            pltpu.VMEM((tb, 1, w), x.dtype),
            pltpu.SemaphoreType.DMA((2,)),
        ],
        # Write-only trick: the output HBM buffer *is* x's buffer, so the kept
        # rows never have to be read or rewritten.
        input_output_aliases={0: 0},
        compiler_params=pltpu.CompilerParams(
            dimension_semantics=("parallel",),
            has_side_effects=True,
        ),
        cost_estimate=pl.CostEstimate(
            flops=0,
            transcendentals=0,
            bytes_accessed=nz * nc * w * itemsize,
        ),
    )(x_v, zstart)
    return out.reshape(n, c, h, w)


# Non-donating entry: XLA inserts one defensive copy of x so the caller's x
# stays valid (used by the tests below, which reuse x across calls).
_batch_crop_jit = jax.jit(_batch_crop_pallas, static_argnames=("ratio",))

# Donating production entry point: x's HBM buffer is reused in place, so total
# HBM traffic is just the (1 - ratio) * size zero-fill.  Not exercised in the
# tests because they need x alive afterwards for the reference comparison.
batch_crop_inplace = jax.jit(
    _batch_crop_pallas, static_argnames=("ratio",), donate_argnums=(0,))


# Below this many bytes a plain fused XLA multiply beats kernel-launch + DMA
# overhead (perf-review small-input fast path).
_PALLAS_MIN_BYTES = 256 * 1024


def _mask_rows_jax(x, start, rw):
    """Plain-JAX x * row-mask (tiny-input fast path)."""
    h = x.shape[-2]
    start = jnp.asarray(start, jnp.int32)
    rows = jnp.arange(h, dtype=jnp.int32)
    keep = ((rows >= start) & (rows < start + rw)) | (rows < start + rw - h)
    return x * keep.astype(x.dtype)[:, None]


def batch_crop(x, ratio, key, training=True, *, use_pallas=None):
    """JAX/Pallas equivalent of BatchCrop.forward.

    x: (N, C, H, W).  ratio: python float.  key: PRNG key replacing Python's
    random.randint for the start row.  training=False is identity (eval mode).
    """
    if not training:
        return x
    h, w = x.shape[-2], x.shape[-1]
    rw = int(ratio * w)
    if h - rw <= 0:
        return x                                  # mask is all ones
    start = jax.random.randint(key, (), 0, h, dtype=jnp.int32)
    if use_pallas is None:
        use_pallas = x.size * jnp.dtype(x.dtype).itemsize >= _PALLAS_MIN_BYTES
    if not use_pallas:
        return _mask_rows_jax(x, start, rw)
    return _batch_crop_jit(x, start, ratio=ratio)


def _reference(x, ratio, start):
    """Literal translation of the PyTorch forward for a Python-int start."""
    n, c, h, w = x.shape
    rw = int(ratio * w)
    if start + rw > h:
        select = list(range(0, start + rw - h)) + list(range(start, h))
    else:
        select = list(range(start, start + rw))
    mask = jnp.zeros_like(x)
    if select:
        mask = mask.at[:, :, jnp.array(select), :].set(1)
    return x * mask


if __name__ == "__main__":
    key = jax.random.PRNGKey(0)
    k_x, k_start = jax.random.split(key)

    N, C, H, W = 2, 4, 16, 16
    ratio = 0.5
    x = jax.random.normal(k_x, (N, C, H, W), dtype=jnp.float32)

    # Deterministic starts covering non-wrap, boundary and wraparound cases.
    for start in (0, 5, 8, 12, 15):
        out = jax.block_until_ready(
            _batch_crop_jit(x, jnp.asarray(start, jnp.int32), ratio=ratio))
        ref = _reference(x, ratio, start)
        assert out.shape == x.shape and out.dtype == x.dtype
        assert jnp.allclose(out, ref), f"mismatch vs reference at start={start}"

    # Randomized training path through the public API, forced onto the kernel.
    out = jax.block_until_ready(
        batch_crop(x, ratio, k_start, training=True, use_pallas=True))
    start_val = int(jax.random.randint(k_start, (), 0, H, dtype=jnp.int32))
    assert jnp.allclose(out, _reference(x, ratio, start_val))

    # Tiny-input fast path (plain JAX) agrees as well.
    out_fast = batch_crop(x, ratio, k_start, training=True, use_pallas=False)
    assert jnp.allclose(out_fast, _reference(x, ratio, start_val))

    # Eval mode is identity.
    assert jnp.allclose(batch_crop(x, ratio, k_start, training=False), x)

    print("KERNEL_OK")
</pallas_src>

<mosaic_0001>
module attributes {stable_mosaic.version = 11 : i64} {
  func.func @kernel(%arg0: i32, %arg1: memref<8x16x16xf32, #tpu.memory_space<any>>, %arg2: memref<1xi32, #tpu.memory_space<smem>>, %arg3: memref<8x16x16xf32, #tpu.memory_space<any>>, %arg4: memref<4x1x16xf32, #tpu.memory_space<vmem>>, %arg5: memref<2x!tpu.dma_semaphore, #tpu.memory_space<semaphore_mem>>) attributes {dimension_semantics = [#tpu.dimension_semantics<parallel>], iteration_bounds = array<i64: 2>, scalar_prefetch = 0 : i64, scratch_operands = 2 : i64, tpu.core_type = #tpu.core_type<tc>, window_params = [{}, {transform_indices = @transform_1, window_bounds = array<i64: 1>}, {}]} {
    %c4_i32 = arith.constant 4 : i32
    %0 = arith.muli %arg0, %c4_i32 : i32
    %c4_i32_0 = arith.constant 4 : i32
    %1 = arith.minsi %0, %c4_i32_0 : i32
    %cst = arith.constant 0.000000e+00 : f32
    %2 = vector.broadcast %cst : f32 to vector<4x1x16xf32>
    %c0 = arith.constant 0 : index
    %c0_1 = arith.constant 0 : index
    %c0_2 = arith.constant 0 : index
    %3 = vector.load %arg4[%c0, %c0_1, %c0_2] : memref<4x1x16xf32, #tpu.memory_space<vmem>>, vector<4x1x16xf32>
    tpu.vector_store %arg4[%c0, %c0_1, %c0_2], %2 {strides = array<i32>} : memref<4x1x16xf32, #tpu.memory_space<vmem>>, vector<4x1x16xf32>,
    %c0_3 = arith.constant 0 : index
    %4 = memref.load %arg2[%c0_3] : memref<1xi32, #tpu.memory_space<smem>>
    %c0_i32 = arith.constant 0 : i32
    %5 = arith.addi %4, %c0_i32 : i32
    %c16_i32 = arith.constant 16 : i32
    %6 = arith.cmpi sge, %5, %c16_i32 : i32
    %c16_i32_4 = arith.constant 16 : i32
    %7 = arith.subi %5, %c16_i32_4 : i32
    %8 = arith.select %6, %7, %5 : i32
    %c0_i32_5 = arith.constant 0 : i32
    %c0_i32_6 = arith.constant 0 : i32
    %9 = tpu.memref_slice %arg3[%1, %8, %c0_i32_6] : memref<8x16x16xf32, #tpu.memory_space<any>> -> memref<4x1x16xf32, #tpu.memory_space<any>>
    %10 = tpu.memref_slice %arg5[%c0_i32_5] : memref<2x!tpu.dma_semaphore, #tpu.memory_space<semaphore_mem>> -> memref<1x!tpu.dma_semaphore, #tpu.memory_space<semaphore_mem>>
    %11 = tpu.memref_squeeze %10 : memref<1x!tpu.dma_semaphore, #tpu.memory_space<semaphore_mem>> -> memref<!tpu.dma_semaphore, #tpu.memory_space<semaphore_mem>>
    tpu.enqueue_dma source(%arg4 : memref<4x1x16xf32, #tpu.memory_space<vmem>>) target(%9 : memref<4x1x16xf32, #tpu.memory_space<any>>) target_semaphore(%11 : memref<!tpu.dma_semaphore, #tpu.memory_space<semaphore_mem>>)
    %c0_i32_7 = arith.constant 0 : i32
    %c8_i32 = arith.constant 8 : i32
    %12 = arith.addi %c0_i32_7, %c8_i32 : i32
    %c1_i32 = arith.constant 1 : i32
    scf.for %arg6 = %c0_i32_7 to %12 step %c1_i32  : i32 {
      %c2_i32 = arith.constant 2 : i32
      %13 = arith.remsi %arg6, %c2_i32 : i32
      %c1_i32_9 = arith.constant 1 : i32
      %14 = arith.addi %arg6, %c1_i32_9 : i32
      %c8_i32_10 = arith.constant 8 : i32
      %15 = arith.cmpi slt, %14, %c8_i32_10 : i32
      %16 = arith.extui %15 : i1 to i32
      %c0_i32_11 = arith.constant 0 : i32
      %17 = arith.cmpi ne, %16, %c0_i32_11 : i32
      scf.if %17 {
        %c1_i32_15 = arith.constant 1 : i32
        %25 = arith.addi %arg6, %c1_i32_15 : i32
        %c1_i32_16 = arith.constant 1 : i32
        %26 = arith.subi %c1_i32_16, %13 : i32
        %27 = arith.addi %4, %25 : i32
        %c16_i32_17 = arith.constant 16 : i32
        %28 = arith.cmpi sge, %27, %c16_i32_17 : i32
        %c16_i32_18 = arith.constant 16 : i32
        %29 = arith.subi %27, %c16_i32_18 : i32
        %30 = arith.select %28, %29, %27 : i32
        %c0_i32_19 = arith.constant 0 : i32
        %31 = tpu.memref_slice %arg3[%1, %30, %c0_i32_19] : memref<8x16x16xf32, #tpu.memory_space<any>> -> memref<4x1x16xf32, #tpu.memory_space<any>>
        %32 = tpu.memref_slice %arg5[%26] : memref<2x!tpu.dma_semaphore, #tpu.memory_space<semaphore_mem>> -> memref<1x!tpu.dma_semaphore, #tpu.memory_space<semaphore_mem>>
        %33 = tpu.memref_squeeze %32 : memref<1x!tpu.dma_semaphore, #tpu.memory_space<semaphore_mem>> -> memref<!tpu.dma_semaphore, #tpu.memory_space<semaphore_mem>>
        tpu.enqueue_dma source(%arg4 : memref<4x1x16xf32, #tpu.memory_space<vmem>>) target(%31 : memref<4x1x16xf32, #tpu.memory_space<any>>) target_semaphore(%33 : memref<!tpu.dma_semaphore, #tpu.memory_space<semaphore_mem>>)
      } else {
      }
      %18 = arith.addi %4, %arg6 : i32
      %c16_i32_12 = arith.constant 16 : i32
      %19 = arith.cmpi sge, %18, %c16_i32_12 : i32
      %c16_i32_13 = arith.constant 16 : i32
      %20 = arith.subi %18, %c16_i32_13 : i32
      %21 = arith.select %19, %20, %18 : i32
      %c0_i32_14 = arith.constant 0 : i32
      %22 = tpu.memref_slice %arg3[%1, %21, %c0_i32_14] : memref<8x16x16xf32, #tpu.memory_space<any>> -> memref<4x1x16xf32, #tpu.memory_space<any>>
      %23 = tpu.memref_slice %arg5[%13] : memref<2x!tpu.dma_semaphore, #tpu.memory_space<semaphore_mem>> -> memref<1x!tpu.dma_semaphore, #tpu.memory_space<semaphore_mem>>
      %24 = tpu.memref_squeeze %23 : memref<1x!tpu.dma_semaphore, #tpu.memory_space<semaphore_mem>> -> memref<!tpu.dma_semaphore, #tpu.memory_space<semaphore_mem>>
      tpu.wait_dma2 semaphore(%24 : memref<!tpu.dma_semaphore, #tpu.memory_space<semaphore_mem>>) src(%arg4 : memref<4x1x16xf32, #tpu.memory_space<vmem>>) dst(%22 : memref<4x1x16xf32, #tpu.memory_space<any>>)
    }
    %c8_i32_8 = arith.constant 8 : i32
    return
  }
  func.func @transform_1(%arg0: i32) -> i32 {
    %c0_i32 = arith.constant 0 : i32
    %c0_i32_0 = arith.constant 0 : i32
    return %c0_i32 : i32
  }
}

</mosaic_0001>

<llo_original>
// kernel: _batch_crop_pallas.1
$region0: #{_batch_crop_pallas.1}
  #allocation0 [shape = 'u32[]', space=smem, size = 0x4, offset = 0x4, fixed_abs, tag = 'smem constant byte address 0x4 - core index']
  #allocation1 [shape = 'u32[144,128]{1,0:T(1,128)}', space=vmem, size = 0x12000, scoped, tag = 'internal scratch']
  #allocation2 [shape = 'f32[4,1,16]{2,1,0:T(1,128)}', space=vmem, size = 0x800, scoped, tag = 'scratch operand']
  #allocation3 [shape = 's32[2]{0}', space=sflag, size = 0x8, scoped, tag = 'scratch operand']
  #allocation4 [shape = 's32[1]{0:T(128)S(6)}', space=smem, size = 0x200, scoped, tag = 'scoped memory for _batch_crop_pallas.1']
  #allocation5 [shape = 's32[]', space=sflag, size = 0x4, offset = 0, fixed_abs, tag = 'sflag constant byte address 0x0 - dummy sync flag']
  #allocation6 [shape = 's32[]', space=sflag, size = 0x4, offset = 0, fixed_abs, tag = 'sflag constant byte address 0x0 - dummy sync flag']
  %s0 = inlined_call_operand.vmem [shape: f32[8,16,16], index: 0, kind: input, shape index: {}, may-alias: {0,2}]
  %s1 = inlined_call_operand.<no memory space> [shape: s32[1], index: 1, kind: input, shape index: {}]
  %s2 = inlined_call_operand.vmem [shape: f32[8,16,16], index: 2, kind: output, shape index: {}, may-alias: {0,2}]
  %s3 = sld [smem:[#allocation0]]
  $region96: #{_batch_crop_pallas.1} parent=0
    _
  %s5 = ssub.s32 1, %s3
  %s6 = scalar_select 0, %s5, %s3
  %7 = sst [smem:[#allocation4]] %s1
  loop: start=0, step=1, limit=3
  $region2: #{_batch_crop_pallas.1} parent=0 // loop_pre_header
    _
  $region3: #{_batch_crop_pallas.1} parent=0 // loop_header
    %s9 = sphi 0, %s13
    %p10 = scmp.ge.s32.totalorder %s9, 3
    %s16 = sphi 0, %s16
    %s18 = sphi 0, %s16
    %s26 = sphi 0, %s18
  $region4: #{_batch_crop_pallas.1} parent=0 // loop_header_branch
    %12 = sbr.rel (%p10) target = $region8
  $region5: #{_batch_crop_pallas.1} parent=0 // loop_body
    %s14 = ssub.s32 %s9, 1
    %s15 = sadd.s32 %s9, 1
    %s17 = sadd.s32 %s16, 1
    %p19 = scmp.eq.s32.totalorder %s9, 1
    %p20 = scmp.ne.s32.totalorder %s16, %s18
    %p21 = scmp.eq.s32.totalorder %s9, 0
    %p22 = por %p20, %p21
    %p23 = scmp.ne.s32.totalorder %s16, %s18
    %p24 = scmp.eq.s32.totalorder %s14, 1
    %p25 = por %p23, %p24
    %p27 = scmp.ne.s32.totalorder %s18, %s26
    %p28 = scmp.eq.s32.totalorder %s14, 0
    %p29 = por %p27, %p28
    %p30 = scmp.le.s32.totalorder 1, %s9
    // Predicated region
    $region9: #{_batch_crop_pallas.1} parent=5 // pred_check
      %p31 = pneg %p30
    $region10: #{_batch_crop_pallas.1} parent=5 // pred_check_branch
      %33 = sbr.rel (%p31) target = $region12
    $region11: #{_batch_crop_pallas.1} parent=5 // pred_region
      %s34 = ssub.s32 %s9, 1
      // Predicated region
      $region13: #{_batch_crop_pallas.1} parent=11 // pred_check
        %p35 = pneg %p29
      $region14: #{_batch_crop_pallas.1} parent=11 // pred_check_branch
        %37 = sbr.rel (%p35) target = $region16
      $region15: #{_batch_crop_pallas.1} parent=11 // pred_region
        _
      $region16: #{_batch_crop_pallas.1} parent=11 // pred_fallthru
        _
    $region12: #{_batch_crop_pallas.1} parent=5 // pred_fallthru
      _
    %p38 = scmp.lt.s32.totalorder %s9, 2
    // Predicated region
    $region17: #{_batch_crop_pallas.1} parent=5 // pred_check
      %p39 = pneg %p38
    $region18: #{_batch_crop_pallas.1} parent=5 // pred_check_branch
      %41 = sbr.rel (%p39) target = $region20
    $region19: #{_batch_crop_pallas.1} parent=5 // pred_region
      _
    $region20: #{_batch_crop_pallas.1} parent=5 // pred_fallthru
      _
    %p42 = scmp.le.s32.totalorder 1, %s9
    // Predicated region
    $region21: #{_batch_crop_pallas.1} parent=5 // pred_check
      %p43 = pneg %p42
    $region22: #{_batch_crop_pallas.1} parent=5 // pred_check_branch
      %45 = sbr.rel (%p43) target = $region24
    $region23: #{_batch_crop_pallas.1} parent=5 // pred_region
      %s46 = ssub.s32 %s9, 1
      %p47 = pneg %p29
      %p48 = pneg %p25
      %s49 = smul.u32 %s14, 4
      %p50 = scmp.lt.s32.totalorder %s49, 4
      %s51 = scalar_select %p50, %s49, 4
      %vm52 = vcmask 122880
      %53 = vst.msk [vmem:[#allocation2] sm:$0x1] %vm52, 0.0
      %54 = vst.msk [vmem:[#allocation2 + $0x1] sm:$0x1] %vm52, 0.0
      %55 = vst.msk [vmem:[#allocation2 + $0x2] sm:$0x1] %vm52, 0.0
      %56 = vst.msk [vmem:[#allocation2 + $0x3] sm:$0x1] %vm52, 0.0
      %s57 = sld [smem:[#allocation4]]
      %p58 = scmp.ge.s32.totalorder %s57, 16
      %s59 = sadd.s32 %s57, 4294967280
      %s60 = scalar_select %p58, %s59, %s57
      %s61 = smul.u32 %s51, 16
      %s62 = sadd.s32 %s60, %s61
      %s63 = scalar_lea.vmem %s2, %s62
      %p65 = scmp.lt.u32.totalorder 1, 8
      %p66 = pneg %p65
      // Predicated region
      $region25: #{_batch_crop_pallas.1} parent=23 // pred_check
        _
      $region26: #{_batch_crop_pallas.1} parent=23 // pred_check_branch
        %68 = sbr.rel (%p65) target = $region28
      $region27: #{_batch_crop_pallas.1} parent=23 // pred_region
        %s89 = sand.u32 1, 7
        %p90 = scmp.eq.s32.totalorder %s89, 0
        %p91 = pneg %p90
        // Predicated region
        $region40: #{_batch_crop_pallas.1} parent=27 // pred_check
          _
        $region41: #{_batch_crop_pallas.1} parent=27 // pred_check_branch
          %93 = sbr.rel (%p90) target = $region43
        $region42: #{_batch_crop_pallas.1} parent=27 // pred_region
          %s94 = sand.u32 1, 7
          %s95 = ssub.s32 1, %s94
          %s96 = scalar_lea.vmem [#allocation2], %s95
          %s97 = ssub.s32 1, %s94
          %s98 = scalar_lea.vmem %s63, %s97
          %s99 = sshllo.u32 0, %s94
          loop: start=0, step=1, limit=1
          $region44: #{_batch_crop_pallas.1} parent=42 // loop_pre_header
            _
          $region45: #{_batch_crop_pallas.1} parent=42 // loop_header
            %s101 = sphi 0, %s105
            %p102 = scmp.ge.s32.totalorder %s101, 1
            %s106 = sphi %s96, %s96
            %s107 = sphi %s98, %s98
          $region46: #{_batch_crop_pallas.1} parent=42 // loop_header_branch
            %104 = sbr.rel (%p102) target = $region50
          $region47: #{_batch_crop_pallas.1} parent=42 // loop_body
            %v108 = vld [vmem:[%s106] sm:%s99]
            %109 = vst [vmem:[%s107] sm:%s99] %v108
            %v110 = vld [vmem:[%s106 + $0x1] sm:%s99]
            %111 = vst [vmem:[%s107 + $0x10] sm:%s99] %v110
            %v112 = vld [vmem:[%s106 + $0x2] sm:%s99]
            %113 = vst [vmem:[%s107 + $0x20] sm:%s99] %v112
            %v114 = vld [vmem:[%s106 + $0x3] sm:%s99]
            %115 = vst [vmem:[%s107 + $0x30] sm:%s99] %v114
          $region48: #{_batch_crop_pallas.1} parent=42 // loop_footer
            %s105 = sadd.s32 1, %s101
          $region49: #{_batch_crop_pallas.1} parent=42 // loop_footer_branch
            %100 = sbr.rel target = $region45
          $region50: #{_batch_crop_pallas.1} parent=42 // loop_exit
            _
        $region43: #{_batch_crop_pallas.1} parent=27 // pred_fallthru
          _
      $region28: #{_batch_crop_pallas.1} parent=23 // pred_fallthru
        _
      // Predicated region
      $region29: #{_batch_crop_pallas.1} parent=23 // pred_check
        %p69 = pneg %p65
      $region30: #{_batch_crop_pallas.1} parent=23 // pred_check_branch
        %71 = sbr.rel (%p69) target = $region32
      $region31: #{_batch_crop_pallas.1} parent=23 // pred_region
        %s72 = sshllo.u32 0, 1
        loop: start=0, step=1, limit=1
        $region33: #{_batch_crop_pallas.1} parent=31 // loop_pre_header
          _
        $region34: #{_batch_crop_pallas.1} parent=31 // loop_header
          %s74 = sphi 0, %s78
          %p75 = scmp.ge.s32.totalorder %s74, 1
          %s79 = sphi [#allocation2], [#allocation2]
          %s80 = sphi %s63, %s63
        $region35: #{_batch_crop_pallas.1} parent=31 // loop_header_branch
          %77 = sbr.rel (%p75) target = $region39
        $region36: #{_batch_crop_pallas.1} parent=31 // loop_body
          %v81 = vld [vmem:[%s79] sm:%s72]
          %82 = vst [vmem:[%s80] sm:%s72] %v81
          %v83 = vld [vmem:[%s79 + $0x1] sm:%s72]
          %84 = vst [vmem:[%s80 + $0x10] sm:%s72] %v83
          %v85 = vld [vmem:[%s79 + $0x2] sm:%s72]
          %86 = vst [vmem:[%s80 + $0x20] sm:%s72] %v85
          %v87 = vld [vmem:[%s79 + $0x3] sm:%s72]
          %88 = vst [vmem:[%s80 + $0x30] sm:%s72] %v87
        $region37: #{_batch_crop_pallas.1} parent=31 // loop_footer
          %s78 = sadd.s32 1, %s74
        $region38: #{_batch_crop_pallas.1} parent=31 // loop_footer_branch
          %73 = sbr.rel target = $region34
        $region39: #{_batch_crop_pallas.1} parent=31 // loop_exit
          _
      $region32: #{_batch_crop_pallas.1} parent=23 // pred_fallthru
        _
      // Predicated region
      $region51: #{_batch_crop_pallas.1} parent=23 // pred_check
        _
      $region52: #{_batch_crop_pallas.1} parent=23 // pred_check_branch
        %118 = sbr.rel (0) target = $region54
      $region53: #{_batch_crop_pallas.1} parent=23 // pred_region
        %119 = vsyncadd [#allocation3], 64
      $region54: #{_batch_crop_pallas.1} parent=23 // pred_fallthru
        _
      loop: start=0, step=1, limit=8
      $region55: #{_batch_crop_pallas.1} parent=23 // loop_pre_header
        _
      $region56: #{_batch_crop_pallas.1} parent=23 // loop_header
        %s121 = sphi 0, %s125
        %p122 = scmp.ge.s32.totalorder %s121, 8
      $region57: #{_batch_crop_pallas.1} parent=23 // loop_header_branch
        %124 = sbr.rel (%p122) target = $region61
      $region58: #{_batch_crop_pallas.1} parent=23 // loop_body
        %p126 = scmp.lt.s32.totalorder %s121, 0
        %s127 = ssub.s32 0, %s121
        %s128 = scalar_select %p126, %s127, %s121
        %s129 = sand.u32 %s128, 1
        %s130 = ssub.s32 0, %s129
        %s131 = scalar_select %p126, %s130, %s129
        %s132 = sadd.s32 %s121, 1
        %p133 = scmp.lt.s32.totalorder %s132, 8
        // Predicated region
        $region62: #{_batch_crop_pallas.1} parent=58 // pred_check
          %p134 = pneg %p133
        $region63: #{_batch_crop_pallas.1} parent=58 // pred_check_branch
          %136 = sbr.rel (%p134) target = $region65
        $region64: #{_batch_crop_pallas.1} parent=58 // pred_region
          %s137 = ssub.s32 1, %s131
          %s138 = sadd.s32 %s57, %s132
          %p139 = scmp.ge.s32.totalorder %s138, 16
          %s140 = ssub.s32 %s138, 16
          %s141 = scalar_select %p139, %s140, %s138
          %s142 = sadd.s32 %s141, %s61
          %s143 = scalar_lea.vmem %s2, %s142
          %s144 = scalar_lea.sflag [#allocation3], %s137
          %p146 = scmp.lt.u32.totalorder 1, 8
          %p147 = pneg %p146
          // Predicated region
          $region66: #{_batch_crop_pallas.1} parent=64 // pred_check
            _
          $region67: #{_batch_crop_pallas.1} parent=64 // pred_check_branch
            %149 = sbr.rel (%p146) target = $region69
          $region68: #{_batch_crop_pallas.1} parent=64 // pred_region
            %s170 = sand.u32 1, 7
            %p171 = scmp.eq.s32.totalorder %s170, 0
            %p172 = pneg %p171
            // Predicated region
            $region81: #{_batch_crop_pallas.1} parent=68 // pred_check
              _
            $region82: #{_batch_crop_pallas.1} parent=68 // pred_check_branch
              %174 = sbr.rel (%p171) target = $region84
            $region83: #{_batch_crop_pallas.1} parent=68 // pred_region
              %s175 = sand.u32 1, 7
              %s176 = ssub.s32 1, %s175
              %s177 = scalar_lea.vmem [#allocation2], %s176
              %s178 = ssub.s32 1, %s175
              %s179 = scalar_lea.vmem %s143, %s178
              %s180 = sshllo.u32 0, %s175
              loop: start=0, step=1, limit=1
              $region85: #{_batch_crop_pallas.1} parent=83 // loop_pre_header
                _
              $region86: #{_batch_crop_pallas.1} parent=83 // loop_header
                %s182 = sphi 0, %s186
                %p183 = scmp.ge.s32.totalorder %s182, 1
                %s187 = sphi %s177, %s177
                %s188 = sphi %s179, %s179
              $region87: #{_batch_crop_pallas.1} parent=83 // loop_header_branch
                %185 = sbr.rel (%p183) target = $region91
              $region88: #{_batch_crop_pallas.1} parent=83 // loop_body
                %v189 = vld [vmem:[%s187] sm:%s180]
                %190 = vst [vmem:[%s188] sm:%s180] %v189
                %v191 = vld [vmem:[%s187 + $0x1] sm:%s180]
                %192 = vst [vmem:[%s188 + $0x10] sm:%s180] %v191
                %v193 = vld [vmem:[%s187 + $0x2] sm:%s180]
                %194 = vst [vmem:[%s188 + $0x20] sm:%s180] %v193
                %v195 = vld [vmem:[%s187 + $0x3] sm:%s180]
                %196 = vst [vmem:[%s188 + $0x30] sm:%s180] %v195
              $region89: #{_batch_crop_pallas.1} parent=83 // loop_footer
                %s186 = sadd.s32 1, %s182
              $region90: #{_batch_crop_pallas.1} parent=83 // loop_footer_branch
                %181 = sbr.rel target = $region86
              $region91: #{_batch_crop_pallas.1} parent=83 // loop_exit
                _
            $region84: #{_batch_crop_pallas.1} parent=68 // pred_fallthru
              _
          $region69: #{_batch_crop_pallas.1} parent=64 // pred_fallthru
            _
          // Predicated region
          $region70: #{_batch_crop_pallas.1} parent=64 // pred_check
            %p150 = pneg %p146
          $region71: #{_batch_crop_pallas.1} parent=64 // pred_check_branch
            %152 = sbr.rel (%p150) target = $region73
          $region72: #{_batch_crop_pallas.1} parent=64 // pred_region
            %s153 = sshllo.u32 0, 1
            loop: start=0, step=1, limit=1
            $region74: #{_batch_crop_pallas.1} parent=72 // loop_pre_header
              _
            $region75: #{_batch_crop_pallas.1} parent=72 // loop_header
              %s155 = sphi 0, %s159
              %p156 = scmp.ge.s32.totalorder %s155, 1
              %s160 = sphi [#allocation2], [#allocation2]
              %s161 = sphi %s143, %s143
            $region76: #{_batch_crop_pallas.1} parent=72 // loop_header_branch
              %158 = sbr.rel (%p156) target = $region80
            $region77: #{_batch_crop_pallas.1} parent=72 // loop_body
              %v162 = vld [vmem:[%s160] sm:%s153]
              %163 = vst [vmem:[%s161] sm:%s153] %v162
              %v164 = vld [vmem:[%s160 + $0x1] sm:%s153]
              %165 = vst [vmem:[%s161 + $0x10] sm:%s153] %v164
              %v166 = vld [vmem:[%s160 + $0x2] sm:%s153]
              %167 = vst [vmem:[%s161 + $0x20] sm:%s153] %v166
              %v168 = vld [vmem:[%s160 + $0x3] sm:%s153]
              %169 = vst [vmem:[%s161 + $0x30] sm:%s153] %v168
            $region78: #{_batch_crop_pallas.1} parent=72 // loop_footer
              %s159 = sadd.s32 1, %s155
            $region79: #{_batch_crop_pallas.1} parent=72 // loop_footer_branch
              %154 = sbr.rel target = $region75
            $region80: #{_batch_crop_pallas.1} parent=72 // loop_exit
              _
          $region73: #{_batch_crop_pallas.1} parent=64 // pred_fallthru
            _
          // Predicated region
          $region92: #{_batch_crop_pallas.1} parent=64 // pred_check
            _
          $region93: #{_batch_crop_pallas.1} parent=64 // pred_check_branch
            %199 = sbr.rel (0) target = $region95
          $region94: #{_batch_crop_pallas.1} parent=64 // pred_region
            %200 = vsyncadd %s144, 64
          $region95: #{_batch_crop_pallas.1} parent=64 // pred_fallthru
            _
        $region65: #{_batch_crop_pallas.1} parent=58 // pred_fallthru
          _
        %s201 = scalar_lea.sflag [#allocation3], %s131
        %s202 = smul.u32 4, 1
        %s203 = smul.u32 %s202, 1
        %s204 = sshll.u32 %s203, 4
        %205 = dma.done %s201, %s204
      $region59: #{_batch_crop_pallas.1} parent=23 // loop_footer
        %s125 = sadd.s32 1, %s121
      $region60: #{_batch_crop_pallas.1} parent=23 // loop_footer_branch
        %120 = sbr.rel target = $region56
      $region61: #{_batch_crop_pallas.1} parent=23 // loop_exit
        _
    $region24: #{_batch_crop_pallas.1} parent=5 // pred_fallthru
      _
  $region6: #{_batch_crop_pallas.1} parent=0 // loop_footer
    %s13 = sadd.s32 1, %s9
  $region7: #{_batch_crop_pallas.1} parent=0 // loop_footer_branch
    %8 = sbr.rel target = $region3
  $region8: #{_batch_crop_pallas.1} parent=0 // loop_exit
    _
  %206 = vsyncmov [#allocation3]
  %s207 = vpop.sfrf %206
  %p208 = scmp.eq.s32.totalorder %s207, 0
  %p209 = pneg %p208
  %211 = shalt.err (%p209)
  %s212 = scalar_lea.sflag [#allocation3], 1
  %213 = vsyncmov %s212
  %s214 = vpop.sfrf %213
  %p215 = scmp.eq.s32.totalorder %s214, 0
  %p216 = pneg %p215
  %218 = shalt.err (%p216)

</llo_original>
